<compile_context>
chip_gen: v7x
topology: tpu7x:2x2x1
jax: 0.10.0
libtpu: 0.0.40
codegen_flags: <defaults>
</compile_context>

<pallas_src>
import math
import functools

import jax
import jax.numpy as jnp
from jax import lax
from jax.experimental import pallas as pl
from jax.experimental.pallas import tpu as pltpu


def _attn_kernel(x_ref, wqkv_ref, bqkv_ref, wo_ref, bo_ref, o_ref, *,
                 num_heads, d_head, compute_dtype, approx_recip):
    F = num_heads * d_head
    x = x_ref[0]                                   # (S, D)
    S = x.shape[0]

    def mm(a, b):
        if compute_dtype is not None:
            a = a.astype(compute_dtype)
            b = b.astype(compute_dtype)
        return jnp.dot(a, b, preferred_element_type=jnp.float32)

    # ---- Fused QKV projection: one wide, lane-dense MXU matmul. ----
    qkv = mm(x, wqkv_ref[...]) + bqkv_ref[...].astype(jnp.float32)   # (S, 3F)

    scale = 1.0 / math.sqrt(d_head)
    q_all = qkv[:, 0:F] * scale          # fold softmax scale into q (mask is {0,-inf})
    k_all = qkv[:, F:2 * F]
    v_all = qkv[:, 2 * F:3 * F]

    # ---- Causal mask generated in-kernel: zero HBM mask traffic. ----
    row = lax.broadcasted_iota(jnp.int32, (S, S), 0)
    col = lax.broadcasted_iota(jnp.int32, (S, S), 1)
    causal = col <= row

    head_outs = []
    for h in range(num_heads):           # static unroll; per-head work is tiny
        sl = slice(h * d_head, (h + 1) * d_head)
        q = q_all[:, sl]
        k = k_all[:, sl]
        v = v_all[:, sl]
        if compute_dtype is not None:
            q = q.astype(compute_dtype)
            k = k.astype(compute_dtype)
        # q @ k^T via dot_general contracting the last axes (no k transpose).
        s = lax.dot_general(q, k, (((1,), (1,)), ((), ())),
                            preferred_element_type=jnp.float32)      # (S, S)
        s = jnp.where(causal, s, -jnp.inf)
        m = jnp.max(s, axis=-1, keepdims=True)
        e = jnp.exp(s - m)
        denom = jnp.sum(e, axis=-1, keepdims=True)
        p = e * pl.reciprocal(denom, approx=approx_recip)
        head_outs.append(mm(p, v))                                   # (S, Dh)

    # ---- Single wide output projection over the (S, H*Dh) slab. ----
    multi = jnp.concatenate(head_outs, axis=-1)                      # (S, F)
    out = mm(multi, wo_ref[...]) + bo_ref[...].astype(jnp.float32)   # (S, D)
    o_ref[0] = out.astype(o_ref.dtype)


def attention_pallas(residual, W_Q, W_K, W_V, W_O, b_Q, b_K, b_V, b_O, *,
                     compute_dtype=None, approx_recip=False):
    """residual: (B, S, D).  W_{Q,K,V}: (H, D, Dh).  W_O: (H*Dh, D).  b_O: (D,)."""
    B, S, D = residual.shape
    H, _, Dh = W_Q.shape
    F = H * Dh

    # Pack Q/K/V weights lane-dense: (D, 3*H*Dh), head-major within each third.
    def to_wide(w):                       # (H, D, Dh) -> (D, H*Dh)
        return jnp.transpose(w, (1, 0, 2)).reshape(D, F)

    W_qkv = jnp.concatenate([to_wide(W_Q), to_wide(W_K), to_wide(W_V)], axis=1)
    b_qkv = jnp.concatenate(
        [b_Q.reshape(F), b_K.reshape(F), b_V.reshape(F)]).reshape(1, 3 * F)
    b_O_2d = b_O.reshape(1, D)

    kernel = functools.partial(_attn_kernel, num_heads=H, d_head=Dh,
                               compute_dtype=compute_dtype,
                               approx_recip=approx_recip)

    grid_spec = pltpu.PrefetchScalarGridSpec(
        num_scalar_prefetch=0,
        grid=(B,),
        in_specs=[
            pl.BlockSpec((1, S, D), lambda b: (b, 0, 0)),    # residual
            pl.BlockSpec((D, 3 * F), lambda b: (0, 0)),      # fused W_{Q,K,V}
            pl.BlockSpec((1, 3 * F), lambda b: (0, 0)),      # fused b_{Q,K,V}
            pl.BlockSpec((F, D), lambda b: (0, 0)),          # W_O
            pl.BlockSpec((1, D), lambda b: (0, 0)),          # b_O
        ],
        out_specs=pl.BlockSpec((1, S, D), lambda b: (b, 0, 0)),
    )

    return pl.pallas_call(
        kernel,
        out_shape=jax.ShapeDtypeStruct((B, S, D), residual.dtype),
        grid_spec=grid_spec,
        compiler_params=pltpu.CompilerParams(
            dimension_semantics=("parallel",),
            vmem_limit_bytes=64 * 1024 * 1024),
    )(residual, W_qkv, b_qkv, W_O, b_O_2d)


def attention_ref(residual, W_Q, W_K, W_V, W_O, b_Q, b_K, b_V, b_O, mask):
    """Pure-JAX reference matching the PyTorch forward exactly."""
    Dh = W_Q.shape[-1]
    Q = jnp.einsum('hmd,bsm->bshd', W_Q, residual) + b_Q
    K = jnp.einsum('hmd,bsm->bshd', W_K, residual) + b_K
    V = jnp.einsum('hmd,bsm->bshd', W_V, residual) + b_V
    QK = jnp.einsum('bqhd,bkhd->bhqk', Q, K)
    soft = jax.nn.softmax((QK + mask) / math.sqrt(Dh), axis=-1)
    attn = jnp.einsum('bhqk,bkhd->bqhd', soft, V)
    B, S = residual.shape[:2]
    multi = attn.reshape(B, S, -1)
    return jnp.einsum('fm,bsf->bsm', W_O, multi) + b_O


if __name__ == "__main__":
    # Small GPT2-ish config.
    batch, d_seq, d_model, num_heads, d_head, num_layers = 2, 8, 32, 4, 8, 2

    key = jax.random.PRNGKey(0)
    ks = jax.random.split(key, 9)
    s = math.sqrt(0.02)
    W_Q = jax.random.normal(ks[0], (num_heads, d_model, d_head), jnp.float32) * s
    W_K = jax.random.normal(ks[1], (num_heads, d_model, d_head), jnp.float32) * s
    W_V = jax.random.normal(ks[2], (num_heads, d_model, d_head), jnp.float32) * s
    W_O = (jax.random.normal(ks[3], (num_heads * d_head, d_model), jnp.float32)
           * s / math.sqrt(num_layers))
    b_Q = jax.random.normal(ks[4], (num_heads, d_head), jnp.float32) * s
    b_K = jax.random.normal(ks[5], (num_heads, d_head), jnp.float32) * s
    b_V = jax.random.normal(ks[6], (num_heads, d_head), jnp.float32) * s
    b_O = jax.random.normal(ks[7], (d_model,), jnp.float32) * s

    residual = jax.random.normal(ks[8], (batch, d_seq, d_model), jnp.float32)

    # The module's causal mask (only needed by the pure-JAX reference — the
    # Pallas kernel generates it in-kernel).
    upper = jnp.triu(jnp.ones((d_seq, d_seq), jnp.float32), k=1)
    mask = jnp.where(upper == 1.0, -jnp.inf, 0.0)
    mask = jnp.broadcast_to(mask, (num_heads, d_seq, d_seq))

    out = attention_pallas(residual, W_Q, W_K, W_V, W_O, b_Q, b_K, b_V, b_O)
    out = jax.block_until_ready(out)

    ref = attention_ref(residual, W_Q, W_K, W_V, W_O, b_Q, b_K, b_V, b_O, mask)
    assert out.shape == (batch, d_seq, d_model)
    assert jnp.allclose(out, ref, atol=1e-4, rtol=1e-4), "mismatch vs reference"

    print("KERNEL_OK")
</pallas_src>

<mosaic_0001>
module attributes {stable_mosaic.version = 11 : i64} {
  func.func @_attn_kernel(%arg0: i32, %arg1: memref<1x8x32xf32, #tpu.memory_space<vmem>>, %arg2: memref<32x96xf32, #tpu.memory_space<vmem>>, %arg3: memref<1x96xf32, #tpu.memory_space<vmem>>, %arg4: memref<32x32xf32, #tpu.memory_space<vmem>>, %arg5: memref<1x32xf32, #tpu.memory_space<vmem>>, %arg6: memref<1x8x32xf32, #tpu.memory_space<vmem>>) attributes {dimension_semantics = [#tpu.dimension_semantics<parallel>], iteration_bounds = array<i64: 2>, scalar_prefetch = 0 : i64, scratch_operands = 0 : i64, tpu.core_type = #tpu.core_type<tc>, window_params = [{transform_indices = @transform_0, window_bounds = array<i64: 1, 8, 32>}, {pipeline_mode = #tpu.pipeline_mode<synchronous>, transform_indices = @transform_1, window_bounds = array<i64: 32, 96>}, {pipeline_mode = #tpu.pipeline_mode<synchronous>, transform_indices = @transform_2, window_bounds = array<i64: 1, 96>}, {pipeline_mode = #tpu.pipeline_mode<synchronous>, transform_indices = @transform_3, window_bounds = array<i64: 32, 32>}, {pipeline_mode = #tpu.pipeline_mode<synchronous>, transform_indices = @transform_4, window_bounds = array<i64: 1, 32>}, {transform_indices = @transform_5, window_bounds = array<i64: 1, 8, 32>}]} {
    %c0 = arith.constant 0 : index
    %c0_0 = arith.constant 0 : index
    %c0_1 = arith.constant 0 : index
    %0 = vector.load %arg1[%c0, %c0_0, %c0_1] : memref<1x8x32xf32, #tpu.memory_space<vmem>>, vector<1x8x32xf32>
    %1 = vector.shape_cast %0 : vector<1x8x32xf32> to vector<8x32xf32>
    %c0_2 = arith.constant 0 : index
    %c0_3 = arith.constant 0 : index
    %2 = vector.load %arg2[%c0_2, %c0_3] : memref<32x96xf32, #tpu.memory_space<vmem>>, vector<32x96xf32>
    %cst = arith.constant dense<0.000000e+00> : vector<8x96xf32>
    %3 = tpu.matmul %1, %2, %cst {dimension_numbers = #tpu.dot_dimension_numbers<[1], [0], [0], [1], [0, 0, 1, 1], [], []>} : vector<8x32xf32>, vector<32x96xf32>, vector<8x96xf32> -> vector<8x96xf32>
    %c0_4 = arith.constant 0 : index
    %c0_5 = arith.constant 0 : index
    %4 = vector.load %arg3[%c0_4, %c0_5] : memref<1x96xf32, #tpu.memory_space<vmem>>, vector<1x96xf32>
    %5 = vector.broadcast %4 : vector<1x96xf32> to vector<8x96xf32>
    %6 = arith.addf %3, %5 : vector<8x96xf32>
    %7 = vector.extract_strided_slice %6 {offsets = [0, 0], sizes = [8, 32], strides = [1, 1]} : vector<8x96xf32> to vector<8x32xf32>
    %cst_6 = arith.constant 0.353553385 : f32
    %8 = vector.broadcast %cst_6 : f32 to vector<8x32xf32>
    %9 = arith.mulf %7, %8 : vector<8x32xf32>
    %10 = vector.extract_strided_slice %6 {offsets = [0, 32], sizes = [8, 32], strides = [1, 1]} : vector<8x96xf32> to vector<8x32xf32>
    %11 = vector.extract_strided_slice %6 {offsets = [0, 64], sizes = [8, 32], strides = [1, 1]} : vector<8x96xf32> to vector<8x32xf32>
    %12 = tpu.iota {dimensions = array<i32: 0>} : vector<8x8xi32>
    %13 = tpu.iota {dimensions = array<i32: 1>} : vector<8x8xi32>
    %14 = arith.cmpi sle, %13, %12 : vector<8x8xi32>
    %15 = vector.extract_strided_slice %9 {offsets = [0, 0], sizes = [8, 8], strides = [1, 1]} : vector<8x32xf32> to vector<8x8xf32>
    %16 = vector.extract_strided_slice %10 {offsets = [0, 0], sizes = [8, 8], strides = [1, 1]} : vector<8x32xf32> to vector<8x8xf32>
    %17 = vector.extract_strided_slice %11 {offsets = [0, 0], sizes = [8, 8], strides = [1, 1]} : vector<8x32xf32> to vector<8x8xf32>
    %cst_7 = arith.constant dense<0.000000e+00> : vector<8x8xf32>
    %18 = tpu.matmul %15, %16, %cst_7 {dimension_numbers = #tpu.dot_dimension_numbers<[1], [1], [0], [0], [0, 0, 1, 0], [], []>} : vector<8x8xf32>, vector<8x8xf32>, vector<8x8xf32> -> vector<8x8xf32>
    %cst_8 = arith.constant 0xFF800000 : f32
    %19 = vector.broadcast %cst_8 : f32 to vector<8x8xf32>
    %20 = arith.select %14, %18, %19 : vector<8x8xi1>, vector<8x8xf32>
    %cst_9 = arith.constant dense<0xFF800000> : vector<8xf32>
    %21 = vector.multi_reduction <maximumf>, %20, %cst_9 [1] : vector<8x8xf32> to vector<8xf32>
    %22 = vector.shape_cast %21 : vector<8xf32> to vector<8x1xf32>
    %23 = vector.broadcast %22 : vector<8x1xf32> to vector<8x8xf32>
    %24 = arith.subf %20, %23 : vector<8x8xf32>
    %25 = math.exp %24 : vector<8x8xf32>
    %cst_10 = arith.constant dense<0.000000e+00> : vector<8xf32>
    %26 = vector.multi_reduction <add>, %25, %cst_10 [1] : vector<8x8xf32> to vector<8xf32>
    %27 = vector.shape_cast %26 : vector<8xf32> to vector<8x1xf32>
    %28 = tpu.reciprocal %27 : vector<8x1xf32> -> vector<8x1xf32>
    %29 = vector.broadcast %28 : vector<8x1xf32> to vector<8x8xf32>
    %30 = arith.mulf %25, %29 : vector<8x8xf32>
    %cst_11 = arith.constant dense<0.000000e+00> : vector<8x8xf32>
    %31 = tpu.matmul %30, %17, %cst_11 {dimension_numbers = #tpu.dot_dimension_numbers<[1], [0], [0], [1], [0, 0, 1, 1], [], []>} : vector<8x8xf32>, vector<8x8xf32>, vector<8x8xf32> -> vector<8x8xf32>
    %32 = vector.extract_strided_slice %9 {offsets = [0, 8], sizes = [8, 8], strides = [1, 1]} : vector<8x32xf32> to vector<8x8xf32>
    %33 = vector.extract_strided_slice %10 {offsets = [0, 8], sizes = [8, 8], strides = [1, 1]} : vector<8x32xf32> to vector<8x8xf32>
    %34 = vector.extract_strided_slice %11 {offsets = [0, 8], sizes = [8, 8], strides = [1, 1]} : vector<8x32xf32> to vector<8x8xf32>
    %cst_12 = arith.constant dense<0.000000e+00> : vector<8x8xf32>
    %35 = tpu.matmul %32, %33, %cst_12 {dimension_numbers = #tpu.dot_dimension_numbers<[1], [1], [0], [0], [0, 0, 1, 0], [], []>} : vector<8x8xf32>, vector<8x8xf32>, vector<8x8xf32> -> vector<8x8xf32>
    %cst_13 = arith.constant 0xFF800000 : f32
    %36 = vector.broadcast %cst_13 : f32 to vector<8x8xf32>
    %37 = arith.select %14, %35, %36 : vector<8x8xi1>, vector<8x8xf32>
    %cst_14 = arith.constant dense<0xFF800000> : vector<8xf32>
    %38 = vector.multi_reduction <maximumf>, %37, %cst_14 [1] : vector<8x8xf32> to vector<8xf32>
    %39 = vector.shape_cast %38 : vector<8xf32> to vector<8x1xf32>
    %40 = vector.broadcast %39 : vector<8x1xf32> to vector<8x8xf32>
    %41 = arith.subf %37, %40 : vector<8x8xf32>
    %42 = math.exp %41 : vector<8x8xf32>
    %cst_15 = arith.constant dense<0.000000e+00> : vector<8xf32>
    %43 = vector.multi_reduction <add>, %42, %cst_15 [1] : vector<8x8xf32> to vector<8xf32>
    %44 = vector.shape_cast %43 : vector<8xf32> to vector<8x1xf32>
    %45 = tpu.reciprocal %44 : vector<8x1xf32> -> vector<8x1xf32>
    %46 = vector.broadcast %45 : vector<8x1xf32> to vector<8x8xf32>
    %47 = arith.mulf %42, %46 : vector<8x8xf32>
    %cst_16 = arith.constant dense<0.000000e+00> : vector<8x8xf32>
    %48 = tpu.matmul %47, %34, %cst_16 {dimension_numbers = #tpu.dot_dimension_numbers<[1], [0], [0], [1], [0, 0, 1, 1], [], []>} : vector<8x8xf32>, vector<8x8xf32>, vector<8x8xf32> -> vector<8x8xf32>
    %49 = vector.extract_strided_slice %9 {offsets = [0, 16], sizes = [8, 8], strides = [1, 1]} : vector<8x32xf32> to vector<8x8xf32>
    %50 = vector.extract_strided_slice %10 {offsets = [0, 16], sizes = [8, 8], strides = [1, 1]} : vector<8x32xf32> to vector<8x8xf32>
    %51 = vector.extract_strided_slice %11 {offsets = [0, 16], sizes = [8, 8], strides = [1, 1]} : vector<8x32xf32> to vector<8x8xf32>
    %cst_17 = arith.constant dense<0.000000e+00> : vector<8x8xf32>
    %52 = tpu.matmul %49, %50, %cst_17 {dimension_numbers = #tpu.dot_dimension_numbers<[1], [1], [0], [0], [0, 0, 1, 0], [], []>} : vector<8x8xf32>, vector<8x8xf32>, vector<8x8xf32> -> vector<8x8xf32>
    %cst_18 = arith.constant 0xFF800000 : f32
    %53 = vector.broadcast %cst_18 : f32 to vector<8x8xf32>
    %54 = arith.select %14, %52, %53 : vector<8x8xi1>, vector<8x8xf32>
    %cst_19 = arith.constant dense<0xFF800000> : vector<8xf32>
    %55 = vector.multi_reduction <maximumf>, %54, %cst_19 [1] : vector<8x8xf32> to vector<8xf32>
    %56 = vector.shape_cast %55 : vector<8xf32> to vector<8x1xf32>
    %57 = vector.broadcast %56 : vector<8x1xf32> to vector<8x8xf32>
    %58 = arith.subf %54, %57 : vector<8x8xf32>
    %59 = math.exp %58 : vector<8x8xf32>
    %cst_20 = arith.constant dense<0.000000e+00> : vector<8xf32>
    %60 = vector.multi_reduction <add>, %59, %cst_20 [1] : vector<8x8xf32> to vector<8xf32>
    %61 = vector.shape_cast %60 : vector<8xf32> to vector<8x1xf32>
    %62 = tpu.reciprocal %61 : vector<8x1xf32> -> vector<8x1xf32>
    %63 = vector.broadcast %62 : vector<8x1xf32> to vector<8x8xf32>
    %64 = arith.mulf %59, %63 : vector<8x8xf32>
    %cst_21 = arith.constant dense<0.000000e+00> : vector<8x8xf32>
    %65 = tpu.matmul %64, %51, %cst_21 {dimension_numbers = #tpu.dot_dimension_numbers<[1], [0], [0], [1], [0, 0, 1, 1], [], []>} : vector<8x8xf32>, vector<8x8xf32>, vector<8x8xf32> -> vector<8x8xf32>
    %66 = vector.extract_strided_slice %9 {offsets = [0, 24], sizes = [8, 8], strides = [1, 1]} : vector<8x32xf32> to vector<8x8xf32>
    %67 = vector.extract_strided_slice %10 {offsets = [0, 24], sizes = [8, 8], strides = [1, 1]} : vector<8x32xf32> to vector<8x8xf32>
    %68 = vector.extract_strided_slice %11 {offsets = [0, 24], sizes = [8, 8], strides = [1, 1]} : vector<8x32xf32> to vector<8x8xf32>
    %cst_22 = arith.constant dense<0.000000e+00> : vector<8x8xf32>
    %69 = tpu.matmul %66, %67, %cst_22 {dimension_numbers = #tpu.dot_dimension_numbers<[1], [1], [0], [0], [0, 0, 1, 0], [], []>} : vector<8x8xf32>, vector<8x8xf32>, vector<8x8xf32> -> vector<8x8xf32>
    %cst_23 = arith.constant 0xFF800000 : f32
    %70 = vector.broadcast %cst_23 : f32 to vector<8x8xf32>
    %71 = arith.select %14, %69, %70 : vector<8x8xi1>, vector<8x8xf32>
    %cst_24 = arith.constant dense<0xFF800000> : vector<8xf32>
    %72 = vector.multi_reduction <maximumf>, %71, %cst_24 [1] : vector<8x8xf32> to vector<8xf32>
    %73 = vector.shape_cast %72 : vector<8xf32> to vector<8x1xf32>
    %74 = vector.broadcast %73 : vector<8x1xf32> to vector<8x8xf32>
    %75 = arith.subf %71, %74 : vector<8x8xf32>
    %76 = math.exp %75 : vector<8x8xf32>
    %cst_25 = arith.constant dense<0.000000e+00> : vector<8xf32>
    %77 = vector.multi_reduction <add>, %76, %cst_25 [1] : vector<8x8xf32> to vector<8xf32>
    %78 = vector.shape_cast %77 : vector<8xf32> to vector<8x1xf32>
    %79 = tpu.reciprocal %78 : vector<8x1xf32> -> vector<8x1xf32>
    %80 = vector.broadcast %79 : vector<8x1xf32> to vector<8x8xf32>
    %81 = arith.mulf %76, %80 : vector<8x8xf32>
    %cst_26 = arith.constant dense<0.000000e+00> : vector<8x8xf32>
    %82 = tpu.matmul %81, %68, %cst_26 {dimension_numbers = #tpu.dot_dimension_numbers<[1], [0], [0], [1], [0, 0, 1, 1], [], []>} : vector<8x8xf32>, vector<8x8xf32>, vector<8x8xf32> -> vector<8x8xf32>
    %83 = tpu.concatenate %31, %48, %65, %82 in 1 : vector<8x8xf32>, vector<8x8xf32>, vector<8x8xf32>, vector<8x8xf32> -> vector<8x32xf32>
    %c0_27 = arith.constant 0 : index
    %c0_28 = arith.constant 0 : index
    %84 = vector.load %arg4[%c0_27, %c0_28] : memref<32x32xf32, #tpu.memory_space<vmem>>, vector<32x32xf32>
    %cst_29 = arith.constant dense<0.000000e+00> : vector<8x32xf32>
    %85 = tpu.matmul %83, %84, %cst_29 {dimension_numbers = #tpu.dot_dimension_numbers<[1], [0], [0], [1], [0, 0, 1, 1], [], []>} : vector<8x32xf32>, vector<32x32xf32>, vector<8x32xf32> -> vector<8x32xf32>
    %c0_30 = arith.constant 0 : index
    %c0_31 = arith.constant 0 : index
    %86 = vector.load %arg5[%c0_30, %c0_31] : memref<1x32xf32, #tpu.memory_space<vmem>>, vector<1x32xf32>
    %87 = vector.broadcast %86 : vector<1x32xf32> to vector<8x32xf32>
    %88 = arith.addf %85, %87 : vector<8x32xf32>
    %c0_32 = arith.constant 0 : index
    %c0_33 = arith.constant 0 : index
    %c0_34 = arith.constant 0 : index
    %89 = vector.load %arg6[%c0_32, %c0_33, %c0_34] : memref<1x8x32xf32, #tpu.memory_space<vmem>>, vector<1x8x32xf32>
    %90 = vector.shape_cast %89 : vector<1x8x32xf32> to vector<8x32xf32>
    %91 = vector.shape_cast %88 : vector<8x32xf32> to vector<1x8x32xf32>
    tpu.vector_store %arg6[%c0_32, %c0_33, %c0_34], %91 {strides = array<i32>} : memref<1x8x32xf32, #tpu.memory_space<vmem>>, vector<1x8x32xf32>,
    return
  }
  func.func @transform_0(%arg0: i32) -> (i32, i32, i32) {
    %c0_i32 = arith.constant 0 : i32
    %c0_i32_0 = arith.constant 0 : i32
    %c0_i32_1 = arith.constant 0 : i32
    return %arg0, %c0_i32, %c0_i32_0 : i32, i32, i32
  }
  func.func @transform_1(%arg0: i32) -> (i32, i32) {
    %c0_i32 = arith.constant 0 : i32
    %c0_i32_0 = arith.constant 0 : i32
    %c0_i32_1 = arith.constant 0 : i32
    return %c0_i32, %c0_i32_0 : i32, i32
  }
  func.func @transform_2(%arg0: i32) -> (i32, i32) {
    %c0_i32 = arith.constant 0 : i32
    %c0_i32_0 = arith.constant 0 : i32
    %c0_i32_1 = arith.constant 0 : i32
    return %c0_i32, %c0_i32_0 : i32, i32
  }
  func.func @transform_3(%arg0: i32) -> (i32, i32) {
    %c0_i32 = arith.constant 0 : i32
    %c0_i32_0 = arith.constant 0 : i32
    %c0_i32_1 = arith.constant 0 : i32
    return %c0_i32, %c0_i32_0 : i32, i32
  }
  func.func @transform_4(%arg0: i32) -> (i32, i32) {
    %c0_i32 = arith.constant 0 : i32
    %c0_i32_0 = arith.constant 0 : i32
    %c0_i32_1 = arith.constant 0 : i32
    return %c0_i32, %c0_i32_0 : i32, i32
  }
  func.func @transform_5(%arg0: i32) -> (i32, i32, i32) {
    %c0_i32 = arith.constant 0 : i32
    %c0_i32_0 = arith.constant 0 : i32
    %c0_i32_1 = arith.constant 0 : i32
    return %arg0, %c0_i32, %c0_i32_0 : i32, i32, i32
  }
}

</mosaic_0001>

<llo_original>
// kernel: tpu_custom_call.1
$region0: #{tpu_custom_call.1}
  #allocation0 [shape = 'u32[]', space=smem, size = 0x4, offset = 0x4, fixed_abs, tag = 'smem constant byte address 0x4 - core index']
  #allocation1 [shape = 'u32[144,128]{1,0:T(1,128)}', space=vmem, size = 0x12000, scoped, tag = 'internal scratch']
  %s0 = inlined_call_operand.hbm [shape: f32[2,8,32], index: 0, kind: input, shape index: {}]
  %s1 = inlined_call_operand.hbm [shape: f32[32,96], index: 1, kind: input, shape index: {}]
  %s2 = inlined_call_operand.hbm [shape: f32[1,96], index: 2, kind: input, shape index: {}]
  %s3 = inlined_call_operand.hbm [shape: f32[32,32], index: 3, kind: input, shape index: {}]
  %s4 = inlined_call_operand.hbm [shape: f32[1,32], index: 4, kind: input, shape index: {}]
  %s5 = inlined_call_operand.hbm [shape: f32[2,8,32], index: 5, kind: output, shape index: {}]
  %s6 = sld [smem:[#allocation0]]
  $region73: #{tpu_custom_call.1} parent=0
    _
  %s8 = ssub.s32 1, %s6
  %s9 = scalar_select 0, %s8, %s6
  $region1: #{tpu_custom_call.1} parent=0
    #allocation2 [shape = 'u8[8192]{0}', space=vmem, size = 0x2000, scoped, tag = 'input window, operand 0']
    #allocation3 [shape = 's32[2]{0}', space=sflag, size = 0x8, scoped, tag = 'scoped memory for tpu_custom_call.1']
    #allocation4 [shape = 's32[2]{0}', space=sflag, size = 0x8, scoped, tag = 'scoped memory for tpu_custom_call.1']
    #allocation5 [shape = 'u8[16384]{0}', space=vmem, size = 0x4000, scoped, tag = 'input window, operand 1, single buffered']
    #allocation6 [shape = 's32[1]{0}', space=sflag, size = 0x4, scoped, tag = 'scoped memory for tpu_custom_call.1']
    #allocation7 [shape = 'u8[512]{0}', space=vmem, size = 0x400, scoped, tag = 'input window, operand 2, single buffered']
    #allocation8 [shape = 'u8[16384]{0}', space=vmem, size = 0x4000, scoped, tag = 'input window, operand 3, single buffered']
    #allocation9 [shape = 's32[1]{0}', space=sflag, size = 0x4, scoped, tag = 'scoped memory for tpu_custom_call.1']
    #allocation10 [shape = 'u8[512]{0}', space=vmem, size = 0x400, scoped, tag = 'input window, operand 4, single buffered']
    #allocation11 [shape = 'u8[8192]{0}', space=vmem, size = 0x2000, scoped, tag = 'output window, operand 0']
    %10 = vsyncpa [#allocation3], 0
    %s11 = scalar_lea.sflag [#allocation3], 1
    %12 = vsyncpa %s11, 0
    %13 = vsyncpa [#allocation6], 0
    %14 = vsyncpa [#allocation9], 0
    %15 = vsyncpa [#allocation4], 0
    %s16 = scalar_lea.sflag [#allocation4], 1
    %17 = vsyncpa %s16, 0
    loop: start=0, step=1, limit=4
    $region2: #{tpu_custom_call.1} parent=1 // loop_pre_header
      _
    $region3: #{tpu_custom_call.1} parent=1 // loop_header
      %s19 = sphi 0, %s23
      %p20 = scmp.ge.s32.totalorder %s19, 4
      %s29 = sphi 0, %s31
      %s32 = sphi 0, %s29
      %s33 = sphi 0, %s32
      %s49 = sphi 0, %s33
      %s53 = sphi 0, %s53
      %s55 = sphi 0, %s53
      %s56 = sphi 0, %s55
      %s70 = sphi 0, %s56
      %s74 = sphi 0, %s74
      %s76 = sphi 0, %s74
      %s77 = sphi 0, %s76
      %s91 = sphi 0, %s77
      %s95 = sphi 0, %s95
      %s97 = sphi 0, %s95
      %s98 = sphi 0, %s97
      %s112 = sphi 0, %s98
      %s116 = sphi 0, %s116
      %s118 = sphi 0, %s116
      %s119 = sphi 0, %s118
      %s133 = sphi 0, %s119
      %s139 = sphi 0, %s141
      %s142 = sphi 0, %s139
      %s143 = sphi 0, %s142
      %s159 = sphi 0, %s143
    $region4: #{tpu_custom_call.1} parent=1 // loop_header_branch
      %22 = sbr.rel (%p20) target = $region8
    $region5: #{tpu_custom_call.1} parent=1 // loop_body
      %s24 = ssub.s32 %s19, 1
      %s25 = ssub.s32 %s19, 2
      %s26 = sadd.s32 %s19, 1
      %s27 = ssub.s32 %s19, %s26
      %p28 = scmp.eq.s32.totalorder %s27, 0
      %s30 = sadd.s32 %s29, 1
      %s31 = scalar_select %p28, %s29, %s30
      %p34 = pneg %p28
      %p35 = scmp.eq.s32.totalorder %s19, 1
      %p36 = por %p34, %p35
      %p37 = scmp.ne.s32.totalorder %s29, %s32
      %p38 = scmp.eq.s32.totalorder %s19, 0
      %p39 = por %p37, %p38
      %p40 = scmp.ne.s32.totalorder %s29, %s32
      %p41 = scmp.eq.s32.totalorder %s24, 1
      %p42 = por %p40, %p41
      %p43 = scmp.ne.s32.totalorder %s32, %s33
      %p44 = scmp.eq.s32.totalorder %s24, 0
      %p45 = por %p43, %p44
      %p46 = scmp.ne.s32.totalorder %s32, %s33
      %p47 = scmp.eq.s32.totalorder %s25, 1
      %p48 = por %p46, %p47
      %p50 = scmp.ne.s32.totalorder %s33, %s49
      %p51 = scmp.eq.s32.totalorder %s25, 0
      %p52 = por %p50, %p51
      %s54 = sadd.s32 %s53, 1
      %p57 = scmp.eq.s32.totalorder %s19, 1
      %p58 = scmp.ne.s32.totalorder %s53, %s55
      %p59 = scmp.eq.s32.totalorder %s19, 0
      %p60 = por %p58, %p59
      %p61 = scmp.ne.s32.totalorder %s53, %s55
      %p62 = scmp.eq.s32.totalorder %s24, 1
      %p63 = por %p61, %p62
      %p64 = scmp.ne.s32.totalorder %s55, %s56
      %p65 = scmp.eq.s32.totalorder %s24, 0
      %p66 = por %p64, %p65
      %p67 = scmp.ne.s32.totalorder %s55, %s56
      %p68 = scmp.eq.s32.totalorder %s25, 1
      %p69 = por %p67, %p68
      %p71 = scmp.ne.s32.totalorder %s56, %s70
      %p72 = scmp.eq.s32.totalorder %s25, 0
      %p73 = por %p71, %p72
      %s75 = sadd.s32 %s74, 1
      %p78 = scmp.eq.s32.totalorder %s19, 1
      %p79 = scmp.ne.s32.totalorder %s74, %s76
      %p80 = scmp.eq.s32.totalorder %s19, 0
      %p81 = por %p79, %p80
      %p82 = scmp.ne.s32.totalorder %s74, %s76
      %p83 = scmp.eq.s32.totalorder %s24, 1
      %p84 = por %p82, %p83
      %p85 = scmp.ne.s32.totalorder %s76, %s77
      %p86 = scmp.eq.s32.totalorder %s24, 0
      %p87 = por %p85, %p86
      %p88 = scmp.ne.s32.totalorder %s76, %s77
      %p89 = scmp.eq.s32.totalorder %s25, 1
      %p90 = por %p88, %p89
      %p92 = scmp.ne.s32.totalorder %s77, %s91
      %p93 = scmp.eq.s32.totalorder %s25, 0
      %p94 = por %p92, %p93
      %s96 = sadd.s32 %s95, 1
      %p99 = scmp.eq.s32.totalorder %s19, 1
      %p100 = scmp.ne.s32.totalorder %s95, %s97
      %p101 = scmp.eq.s32.totalorder %s19, 0
      %p102 = por %p100, %p101
      %p103 = scmp.ne.s32.totalorder %s95, %s97
      %p104 = scmp.eq.s32.totalorder %s24, 1
      %p105 = por %p103, %p104
      %p106 = scmp.ne.s32.totalorder %s97, %s98
      %p107 = scmp.eq.s32.totalorder %s24, 0
      %p108 = por %p106, %p107
      %p109 = scmp.ne.s32.totalorder %s97, %s98
      %p110 = scmp.eq.s32.totalorder %s25, 1
      %p111 = por %p109, %p110
      %p113 = scmp.ne.s32.totalorder %s98, %s112
      %p114 = scmp.eq.s32.totalorder %s25, 0
      %p115 = por %p113, %p114
      %s117 = sadd.s32 %s116, 1
      %p120 = scmp.eq.s32.totalorder %s19, 1
      %p121 = scmp.ne.s32.totalorder %s116, %s118
      %p122 = scmp.eq.s32.totalorder %s19, 0
      %p123 = por %p121, %p122
      %p124 = scmp.ne.s32.totalorder %s116, %s118
      %p125 = scmp.eq.s32.totalorder %s24, 1
      %p126 = por %p124, %p125
      %p127 = scmp.ne.s32.totalorder %s118, %s119
      %p128 = scmp.eq.s32.totalorder %s24, 0
      %p129 = por %p127, %p128
      %p130 = scmp.ne.s32.totalorder %s118, %s119
      %p131 = scmp.eq.s32.totalorder %s25, 1
      %p132 = por %p130, %p131
      %p134 = scmp.ne.s32.totalorder %s119, %s133
      %p135 = scmp.eq.s32.totalorder %s25, 0
      %p136 = por %p134, %p135
      %s137 = ssub.s32 %s19, %s26
      %p138 = scmp.eq.s32.totalorder %s137, 0
      %s140 = sadd.s32 %s139, 1
      %s141 = scalar_select %p138, %s139, %s140
      %p144 = pneg %p138
      %p145 = scmp.eq.s32.totalorder %s19, 1
      %p146 = por %p144, %p145
      %p147 = scmp.ne.s32.totalorder %s139, %s142
      %p148 = scmp.eq.s32.totalorder %s19, 0
      %p149 = por %p147, %p148
      %p150 = scmp.ne.s32.totalorder %s139, %s142
      %p151 = scmp.eq.s32.totalorder %s24, 1
      %p152 = por %p150, %p151
      %p153 = scmp.ne.s32.totalorder %s142, %s143
      %p154 = scmp.eq.s32.totalorder %s24, 0
      %p155 = por %p153, %p154
      %p156 = scmp.ne.s32.totalorder %s142, %s143
      %p157 = scmp.eq.s32.totalorder %s25, 1
      %p158 = por %p156, %p157
      %p160 = scmp.ne.s32.totalorder %s143, %s159
      %p161 = scmp.eq.s32.totalorder %s25, 0
      %p162 = por %p160, %p161
      %p163 = scmp.le.s32.totalorder 1, %s19
      %p164 = scmp.lt.s32.totalorder %s19, 3
      %p165 = pnand %p163, %p164
      %p166 = pneg %p165
      // Predicated region
      $region9: #{tpu_custom_call.1} parent=5 // pred_check
        _
      $region10: #{tpu_custom_call.1} parent=5 // pred_check_branch
        %168 = sbr.rel (%p165) target = $region12
      $region11: #{tpu_custom_call.1} parent=5 // pred_region
        %s169 = ssub.s32 %s19, 1
        // Predicated region
        $region13: #{tpu_custom_call.1} parent=11 // pred_check
          %p170 = pneg %p66
        $region14: #{tpu_custom_call.1} parent=11 // pred_check_branch
          %172 = sbr.rel (%p170) target = $region16
        $region15: #{tpu_custom_call.1} parent=11 // pred_region
          %s174 = ssub.s32 512, 512
          %175 = vsyncadd [#allocation6], %s174
          %s176 = sshll.u32 [#allocation5], 4
          %s177 = int_to_ptr.vmem [resolvable:$true] %s176
          %182 = dma.hbm_to_vmem [thread:$0]  %s1, 512, %s177, [#allocation6], 128, 128, 8
        $region16: #{tpu_custom_call.1} parent=11 // pred_fallthru
          _
        // Predicated region
        $region17: #{tpu_custom_call.1} parent=11 // pred_check
          %p183 = pneg %p87
        $region18: #{tpu_custom_call.1} parent=11 // pred_check_branch
          %185 = sbr.rel (%p183) target = $region20
        $region19: #{tpu_custom_call.1} parent=11 // pred_region
          %s187 = ssub.s32 16, 16
          %188 = vsyncadd [#allocation6], %s187
          %s190 = sshll.u32 [#allocation7], 4
          %s191 = int_to_ptr.vmem [resolvable:$true] %s190
          %193 = dma.hbm_to_vmem [thread:$0]  %s2, 16, %s191, [#allocation6]
        $region20: #{tpu_custom_call.1} parent=11 // pred_fallthru
          _
        // Predicated region
        $region21: #{tpu_custom_call.1} parent=11 // pred_check
          %p194 = pneg %p108
        $region22: #{tpu_custom_call.1} parent=11 // pred_check_branch
          %196 = sbr.rel (%p194) target = $region24
        $region23: #{tpu_custom_call.1} parent=11 // pred_region
          %s198 = ssub.s32 512, 512
          %199 = vsyncadd [#allocation9], %s198
          %s200 = sshll.u32 [#allocation8], 4
          %s201 = int_to_ptr.vmem [resolvable:$true] %s200
          %206 = dma.hbm_to_vmem [thread:$0]  %s3, 512, %s201, [#allocation9], 128, 128, 8
        $region24: #{tpu_custom_call.1} parent=11 // pred_fallthru
          _
        // Predicated region
        $region25: #{tpu_custom_call.1} parent=11 // pred_check
          %p207 = pneg %p129
        $region26: #{tpu_custom_call.1} parent=11 // pred_check_branch
          %209 = sbr.rel (%p207) target = $region28
        $region27: #{tpu_custom_call.1} parent=11 // pred_region
          %s211 = ssub.s32 16, 16
          %212 = vsyncadd [#allocation9], %s211
          %s214 = sshll.u32 [#allocation10], 4
          %s215 = int_to_ptr.vmem [resolvable:$true] %s214
          %217 = dma.hbm_to_vmem [thread:$0]  %s4, 16, %s215, [#allocation9]
        $region28: #{tpu_custom_call.1} parent=11 // pred_fallthru
          _
      $region12: #{tpu_custom_call.1} parent=5 // pred_fallthru
        _
      %p218 = scmp.lt.s32.totalorder %s19, 2
      // Predicated region
      $region29: #{tpu_custom_call.1} parent=5 // pred_check
        %p219 = pneg %p218
      $region30: #{tpu_custom_call.1} parent=5 // pred_check_branch
        %221 = sbr.rel (%p219) target = $region32
      $region31: #{tpu_custom_call.1} parent=5 // pred_region
        // Predicated region
        $region33: #{tpu_custom_call.1} parent=31 // pred_check
          %p222 = pneg %p39
        $region34: #{tpu_custom_call.1} parent=31 // pred_check_branch
          %224 = sbr.rel (%p222) target = $region36
        $region35: #{tpu_custom_call.1} parent=31 // pred_region
          %s225 = sand.u32 %s29, 1
          %s226 = scalar_lea.sflag [#allocation3], %s225
          %s227 = sand.u32 %s29, 1
          %s228 = smul.addr %s227, 8
          %s229 = scalar_lea.vmem [#allocation2], %s228
          %s231 = ssub.s32 128, 128
          %232 = vsyncadd %s226, %s231
          %s233 = smul.addr %s19, 128
          %s234 = scalar_lea.hbm %s0, %s233
          %s236 = sshll.u32 %s229, 4
          %s237 = int_to_ptr.vmem [resolvable:$true] %s236
          %239 = dma.hbm_to_vmem [thread:$0]  %s234, 128, %s237, %s226
        $region36: #{tpu_custom_call.1} parent=31 // pred_fallthru
          _
      $region32: #{tpu_custom_call.1} parent=5 // pred_fallthru
        _
      %p240 = scmp.le.s32.totalorder 1, %s19
      %p241 = scmp.lt.s32.totalorder %s19, 3
      %p242 = pnand %p240, %p241
      %p243 = pneg %p242
      // Predicated region
      $region37: #{tpu_custom_call.1} parent=5 // pred_check
        _
      $region38: #{tpu_custom_call.1} parent=5 // pred_check_branch
        %245 = sbr.rel (%p242) target = $region40
      $region39: #{tpu_custom_call.1} parent=5 // pred_region
        %s246 = ssub.s32 %s19, 1
        %s247 = sand.u32 %s32, 1
        %s248 = scalar_lea.sflag [#allocation3], %s247
        %s249 = sand.u32 %s32, 1
        %s250 = smul.addr %s249, 8
        %s251 = scalar_lea.vmem [#allocation2], %s250
        // Predicated region
        $region41: #{tpu_custom_call.1} parent=39 // pred_check
          %p252 = pneg %p45
        $region42: #{tpu_custom_call.1} parent=39 // pred_check_branch
          %254 = sbr.rel (%p252) target = $region44
        $region43: #{tpu_custom_call.1} parent=39 // pred_region
          %255 = dma.done %s248, 128
        $region44: #{tpu_custom_call.1} parent=39 // pred_fallthru
          _
        // Predicated region
        $region45: #{tpu_custom_call.1} parent=39 // pred_check
          %p256 = pneg %p66
        $region46: #{tpu_custom_call.1} parent=39 // pred_check_branch
          %258 = sbr.rel (%p256) target = $region48
        $region47: #{tpu_custom_call.1} parent=39 // pred_region
          %259 = dma.done [#allocation6], 512
        $region48: #{tpu_custom_call.1} parent=39 // pred_fallthru
          _
        // Predicated region
        $region49: #{tpu_custom_call.1} parent=39 // pred_check
          %p260 = pneg %p87
        $region50: #{tpu_custom_call.1} parent=39 // pred_check_branch
          %262 = sbr.rel (%p260) target = $region52
        $region51: #{tpu_custom_call.1} parent=39 // pred_region
          %263 = dma.done [#allocation6], 16
        $region52: #{tpu_custom_call.1} parent=39 // pred_fallthru
          _
        // Predicated region
        $region53: #{tpu_custom_call.1} parent=39 // pred_check
          %p264 = pneg %p108
        $region54: #{tpu_custom_call.1} parent=39 // pred_check_branch
          %266 = sbr.rel (%p264) target = $region56
        $region55: #{tpu_custom_call.1} parent=39 // pred_region
          %267 = dma.done [#allocation9], 512
        $region56: #{tpu_custom_call.1} parent=39 // pred_fallthru
          _
        // Predicated region
        $region57: #{tpu_custom_call.1} parent=39 // pred_check
          %p268 = pneg %p129
        $region58: #{tpu_custom_call.1} parent=39 // pred_check_branch
          %270 = sbr.rel (%p268) target = $region60
        $region59: #{tpu_custom_call.1} parent=39 // pred_region
          %271 = dma.done [#allocation9], 16
        $region60: #{tpu_custom_call.1} parent=39 // pred_fallthru
          _
        %s272 = sand.u32 %s32, 1
        %s273 = scalar_lea.sflag [#allocation3], %s272
        %s274 = sand.u32 %s32, 1
        %s275 = smul.addr %s274, 8
        %s276 = scalar_lea.vmem [#allocation2], %s275
        %p277 = pneg %p45
        %p278 = pneg %p42
        %p279 = pneg %p66
        %p280 = pneg %p63
        %p281 = pneg %p87
        %p282 = pneg %p84
        %p283 = pneg %p108
        %p284 = pneg %p105
        %p285 = pneg %p129
        %p286 = pneg %p126
        %p287 = pneg %p155
        %p288 = pneg %p152
        %s289 = sand.u32 %s142, 1
        %s290 = scalar_lea.sflag [#allocation4], %s289
        %s291 = sand.u32 %s142, 1
        %s292 = smul.addr %s291, 8
        %s293 = scalar_lea.vmem [#allocation11], %s292
        %v294 = vld [vmem:[%s251] sm:$0xff]
        %v295 = vld [vmem:[#allocation5] sm:$0xff]
        %v296 = vld [vmem:[#allocation5 + $0x8] sm:$0xff]
        %v297 = vld [vmem:[#allocation5 + $0x10] sm:$0xff]
        %v298 = vld [vmem:[#allocation5 + $0x18] sm:$0xff]
        %v299 = vld [vmem:[#allocation7] sm:$0x1]
        %v301 = vlaneseq
        %v302 = vshrl.u32 %v301, 7
        %v303 = vsub.s32 0, %v302
        %v304 = vrot.slane %v299, %v303
        %vm306 = vcmask 261120
        %v308 = vsel %vm306, %v294, 0
        %310 = vmatprep.subr.mxu0 0.0
        %311 = vmatpush1.msra.mxu0 %v295
        %312 = vmatprep.subr.mxu0 0.0
        %313 = vmatpush1.msra.mxu0 %v296
        %314 = vmatprep.subr.mxu0 0.0
        %315 = vmatpush1.msra.mxu0 %v297
        %316 = vmatprep.subr.mxu0 0.0
        %317 = vmatpush1.msra.mxu0 %v298
        %318 = vmatprep.subr.mxu0 0.0
        %319 = vmatpush1.msra.mxu0 0.0
        %320 = vmatprep.subr.mxu0 0.0
        %321 = vmatpush1.msra.mxu0 0.0
        %322 = vmatprep.subr.mxu0 0.0
        %323 = vmatpush1.msra.mxu0 0.0
        %324 = vmatprep.subr.mxu0 0.0
        %325 = vmatpush1.msra.mxu0 0.0
        %326 = vmatprep.subr.mxu0 0.0
        %327 = vmatpush1.msra.mxu0 0.0
        %328 = vmatprep.subr.mxu0 0.0
        %329 = vmatpush1.msra.mxu0 0.0
        %330 = vmatprep.subr.mxu0 0.0
        %331 = vmatpush1.msra.mxu0 0.0
        %332 = vmatprep.subr.mxu0 0.0
        %333 = vmatpush1.msra.mxu0 0.0
        %334 = vmatprep.subr.mxu0 0.0
        %335 = vmatpush1.msra.mxu0 0.0
        %336 = vmatprep.subr.mxu0 0.0
        %337 = vmatpush1.msra.mxu0 0.0
        %338 = vmatprep.subr.mxu0 0.0
        %339 = vmatpush1.msra.mxu0 0.0
        %340 = vmatprep.subr.mxu0 0.0
        %341 = vmatpush1.msra.mxu0 0.0
        %342 = vmatprep.subr.mxu0 0.0
        %343 = vmatpush1.msra.mxu0 0.0
        %344 = vmatprep.subr.mxu0 0.0
        %345 = vmatpush1.msra.mxu0 0.0
        %346 = vmatprep.subr.mxu0 0.0
        %347 = vmatpush1.msra.mxu0 0.0
        %348 = vmatprep.subr.mxu0 0.0
        %349 = vmatpush1.msra.mxu0 0.0
        %350 = vmatprep.subr.mxu0 0.0
        %351 = vmatpush1.msra.mxu0 0.0
        %352 = vmatprep.subr.mxu0 0.0
        %353 = vmatpush1.msra.mxu0 0.0
        %354 = vmatprep.subr.mxu0 0.0
        %355 = vmatpush1.msra.mxu0 0.0
        %356 = vmatprep.subr.mxu0 0.0
        %357 = vmatpush1.msra.mxu0 0.0
        %358 = vmatprep.subr.mxu0 0.0
        %359 = vmatpush1.msra.mxu0 0.0
        %360 = vmatprep.subr.mxu0 0.0
        %361 = vmatpush1.msra.mxu0 0.0
        %362 = vmatprep.subr.mxu0 0.0
        %363 = vmatpush1.msra.mxu0 0.0
        %364 = vmatprep.subr.mxu0 0.0
        %365 = vmatpush1.msra.mxu0 0.0
        %366 = vmatprep.subr.mxu0 0.0
        %367 = vmatpush1.msra.mxu0 0.0
        %368 = vmatprep.subr.mxu0 0.0
        %369 = vmatpush1.msra.mxu0 0.0
        %370 = vmatprep.subr.mxu0 0.0
        %371 = vmatpush1.msra.mxu0 0.0
        %372 = vmatprep.subr.mxu0 0.0
        %373 = vmatpush1.msra.mxu0 0.0
        %374 = vmatprep.mubr.f32.mxu0 0.0
        %375 = vmatmul.mubr.f32.gmra.mrb[0].mxu0 %v308
        %v376 = vpop.f32.mrb[0].mxu0
        %v377 = vadd.f32 %v304, %v376
        %v378 = vpop.f32.mrb[0].mxu0
        %379 = vdwg.mxu0
        %v380 = vmul.f32 %v377, 0.35355338
        %v381 = vlaneseq
        %v382 = vshrl.u32 %v381, 7
        %v383 = vlaneseq
        %v384 = vand.u32 %v383, 127
        %vm385 = vcmp.le.s32.totalorder %v384, %v382
        %387 = vrot.lane.b32.xlu0 %v377, 96
        %v388 = vpop.permute.xlu0 %387
        %vm389 = vcmask 64512
        %v391 = vsel %vm389, %v380, 0
        %v393 = vsel %vm389, %v388, 0
        %395 = vmatprep.subr.mxu0 0.0
        %396 = vmatpush1.xpose.msra.mxu0 %v393
        %397 = vmatprep.subr.mxu0 0.0
        %398 = vmatpush1.xpose.msra.mxu0 0.0
        %399 = vmatprep.subr.mxu0 0.0
        %400 = vmatpush1.xpose.msra.mxu0 0.0
        %401 = vmatprep.subr.mxu0 0.0
        %402 = vmatpush1.xpose.msra.mxu0 0.0
        %403 = vmatprep.subr.mxu0 0.0
        %404 = vmatpush1.xpose.msra.mxu0 0.0
        %405 = vmatprep.subr.mxu0 0.0
        %406 = vmatpush1.xpose.msra.mxu0 0.0
        %407 = vmatprep.subr.mxu0 0.0
        %408 = vmatpush1.xpose.msra.mxu0 0.0
        %409 = vmatprep.subr.mxu0 0.0
        %410 = vmatpush1.xpose.msra.mxu0 0.0
        %411 = vmatprep.subr.mxu0 0.0
        %412 = vmatpush1.xpose.msra.mxu0 0.0
        %413 = vmatprep.subr.mxu0 0.0
        %414 = vmatpush1.xpose.msra.mxu0 0.0
        %415 = vmatprep.subr.mxu0 0.0
        %416 = vmatpush1.xpose.msra.mxu0 0.0
        %417 = vmatprep.subr.mxu0 0.0
        %418 = vmatpush1.xpose.msra.mxu0 0.0
        %419 = vmatprep.subr.mxu0 0.0
        %420 = vmatpush1.xpose.msra.mxu0 0.0
        %421 = vmatprep.subr.mxu0 0.0
        %422 = vmatpush1.xpose.msra.mxu0 0.0
        %423 = vmatprep.subr.mxu0 0.0
        %424 = vmatpush1.xpose.msra.mxu0 0.0
        %425 = vmatprep.subr.mxu0 0.0
        %426 = vmatpush1.xpose.msra.mxu0 0.0
        %427 = vmatprep.subr.mxu0 0.0
        %428 = vmatpush1.xpose.msra.mxu0 0.0
        %429 = vmatprep.subr.mxu0 0.0
        %430 = vmatpush1.xpose.msra.mxu0 0.0
        %431 = vmatprep.subr.mxu0 0.0
        %432 = vmatpush1.xpose.msra.mxu0 0.0
        %433 = vmatprep.subr.mxu0 0.0
        %434 = vmatpush1.xpose.msra.mxu0 0.0
        %435 = vmatprep.subr.mxu0 0.0
        %436 = vmatpush1.xpose.msra.mxu0 0.0
        %437 = vmatprep.subr.mxu0 0.0
        %438 = vmatpush1.xpose.msra.mxu0 0.0
        %439 = vmatprep.subr.mxu0 0.0
        %440 = vmatpush1.xpose.msra.mxu0 0.0
        %441 = vmatprep.subr.mxu0 0.0
        %442 = vmatpush1.xpose.msra.mxu0 0.0
        %443 = vmatprep.subr.mxu0 0.0
        %444 = vmatpush1.xpose.msra.mxu0 0.0
        %445 = vmatprep.subr.mxu0 0.0
        %446 = vmatpush1.xpose.msra.mxu0 0.0
        %447 = vmatprep.subr.mxu0 0.0
        %448 = vmatpush1.xpose.msra.mxu0 0.0
        %449 = vmatprep.subr.mxu0 0.0
        %450 = vmatpush1.xpose.msra.mxu0 0.0
        %451 = vmatprep.subr.mxu0 0.0
        %452 = vmatpush1.xpose.msra.mxu0 0.0
        %453 = vmatprep.subr.mxu0 0.0
        %454 = vmatpush1.xpose.msra.mxu0 0.0
        %455 = vmatprep.subr.mxu0 0.0
        %456 = vmatpush1.xpose.msra.mxu0 0.0
        %457 = vmatprep.subr.mxu0 0.0
        %458 = vmatpush1.xpose.msra.mxu0 0.0
        %459 = vmatprep.mubr.f32.mxu0 0.0
        %460 = vmatmul.mubr.f32.gmra.mrb[0].mxu0 %v391
        %v461 = vpop.f32.mrb[0].mxu0
        %v462 = vadd.f32 0.0, %v461
        %v463 = vpop.f32.mrb[0].mxu0
        %464 = vdwg.mxu0
        %v465 = vsel %vm385, %v462, -inf
        %v466 = vsel %vm389, %v465, -inf
        %467 = vmax.xlane.f32.xlu0 %v466
        %v468 = vpop.xlane.xlu0 %467
        %v469 = vsub.f32 %v465, %v468
        %v470 = vmul.f32 %v469, 1.442695
        %v471 = vpow.pop %v470
        %v472 = vsel %vm389, %v471, 0.0
        %473 = vadd.xlane.f32.xlu0 %v472
        %v474 = vpop.xlane.xlu0 %473
        %v475 = vrcp.pop %v474
        %v476 = vmul.f32 %v471, %v475
        %477 = vrot.lane.b32.xlu0 %v377, 64
        %v478 = vpop.permute.xlu0 %477
        %v481 = vsel %vm389, %v476, 0
        %483 = vmatprep.subr.mxu0 0.0
        %484 = vmatpush1.msra.mxu0 %v478
        %485 = vmatprep.subr.mxu0 0.0
        %486 = vmatpush1.msra.mxu0 0.0
        %487 = vmatprep.subr.mxu0 0.0
        %488 = vmatpush1.msra.mxu0 0.0
        %489 = vmatprep.subr.mxu0 0.0
        %490 = vmatpush1.msra.mxu0 0.0
        %491 = vmatprep.subr.mxu0 0.0
        %492 = vmatpush1.msra.mxu0 0.0
        %493 = vmatprep.subr.mxu0 0.0
        %494 = vmatpush1.msra.mxu0 0.0
        %495 = vmatprep.subr.mxu0 0.0
        %496 = vmatpush1.msra.mxu0 0.0
        %497 = vmatprep.subr.mxu0 0.0
        %498 = vmatpush1.msra.mxu0 0.0
        %499 = vmatprep.subr.mxu0 0.0
        %500 = vmatpush1.msra.mxu0 0.0
        %501 = vmatprep.subr.mxu0 0.0
        %502 = vmatpush1.msra.mxu0 0.0
        %503 = vmatprep.subr.mxu0 0.0
        %504 = vmatpush1.msra.mxu0 0.0
        %505 = vmatprep.subr.mxu0 0.0
        %506 = vmatpush1.msra.mxu0 0.0
        %507 = vmatprep.subr.mxu0 0.0
        %508 = vmatpush1.msra.mxu0 0.0
        %509 = vmatprep.subr.mxu0 0.0
        %510 = vmatpush1.msra.mxu0 0.0
        %511 = vmatprep.subr.mxu0 0.0
        %512 = vmatpush1.msra.mxu0 0.0
        %513 = vmatprep.subr.mxu0 0.0
        %514 = vmatpush1.msra.mxu0 0.0
        %515 = vmatprep.subr.mxu0 0.0
        %516 = vmatpush1.msra.mxu0 0.0
        %517 = vmatprep.subr.mxu0 0.0
        %518 = vmatpush1.msra.mxu0 0.0
        %519 = vmatprep.subr.mxu0 0.0
        %520 = vmatpush1.msra.mxu0 0.0
        %521 = vmatprep.subr.mxu0 0.0
        %522 = vmatpush1.msra.mxu0 0.0
        %523 = vmatprep.subr.mxu0 0.0
        %524 = vmatpush1.msra.mxu0 0.0
        %525 = vmatprep.subr.mxu0 0.0
        %526 = vmatpush1.msra.mxu0 0.0
        %527 = vmatprep.subr.mxu0 0.0
        %528 = vmatpush1.msra.mxu0 0.0
        %529 = vmatprep.subr.mxu0 0.0
        %530 = vmatpush1.msra.mxu0 0.0
        %531 = vmatprep.subr.mxu0 0.0
        %532 = vmatpush1.msra.mxu0 0.0
        %533 = vmatprep.subr.mxu0 0.0
        %534 = vmatpush1.msra.mxu0 0.0
        %535 = vmatprep.subr.mxu0 0.0
        %536 = vmatpush1.msra.mxu0 0.0
        %537 = vmatprep.subr.mxu0 0.0
        %538 = vmatpush1.msra.mxu0 0.0
        %539 = vmatprep.subr.mxu0 0.0
        %540 = vmatpush1.msra.mxu0 0.0
        %541 = vmatprep.subr.mxu0 0.0
        %542 = vmatpush1.msra.mxu0 0.0
        %543 = vmatprep.subr.mxu0 0.0
        %544 = vmatpush1.msra.mxu0 0.0
        %545 = vmatprep.subr.mxu0 0.0
        %546 = vmatpush1.msra.mxu0 0.0
        %547 = vmatprep.mubr.f32.mxu0 0.0
        %548 = vmatmul.mubr.f32.gmra.mrb[0].mxu0 %v481
        %v549 = vpop.f32.mrb[0].mxu0
        %v550 = vadd.f32 0.0, %v549
        %v551 = vpop.f32.mrb[0].mxu0
        %552 = vdwg.mxu0
        %553 = vrot.lane.b32.xlu0 %v380, 120
        %v554 = vpop.permute.xlu0 %553
        %555 = vrot.lane.b32.xlu0 %v377, 88
        %v556 = vpop.permute.xlu0 %555
        %v557 = vsel %vm389, %v554, 0
        %v559 = vsel %vm389, %v556, 0
        %561 = vmatprep.subr.mxu0 0.0
        %562 = vmatpush1.xpose.msra.mxu0 %v559
        %563 = vmatprep.subr.mxu0 0.0
        %564 = vmatpush1.xpose.msra.mxu0 0.0
        %565 = vmatprep.subr.mxu0 0.0
        %566 = vmatpush1.xpose.msra.mxu0 0.0
        %567 = vmatprep.subr.mxu0 0.0
        %568 = vmatpush1.xpose.msra.mxu0 0.0
        %569 = vmatprep.subr.mxu0 0.0
        %570 = vmatpush1.xpose.msra.mxu0 0.0
        %571 = vmatprep.subr.mxu0 0.0
        %572 = vmatpush1.xpose.msra.mxu0 0.0
        %573 = vmatprep.subr.mxu0 0.0
        %574 = vmatpush1.xpose.msra.mxu0 0.0
        %575 = vmatprep.subr.mxu0 0.0
        %576 = vmatpush1.xpose.msra.mxu0 0.0
        %577 = vmatprep.subr.mxu0 0.0
        %578 = vmatpush1.xpose.msra.mxu0 0.0
        %579 = vmatprep.subr.mxu0 0.0
        %580 = vmatpush1.xpose.msra.mxu0 0.0
        %581 = vmatprep.subr.mxu0 0.0
        %582 = vmatpush1.xpose.msra.mxu0 0.0
        %583 = vmatprep.subr.mxu0 0.0
        %584 = vmatpush1.xpose.msra.mxu0 0.0
        %585 = vmatprep.subr.mxu0 0.0
        %586 = vmatpush1.xpose.msra.mxu0 0.0
        %587 = vmatprep.subr.mxu0 0.0
        %588 = vmatpush1.xpose.msra.mxu0 0.0
        %589 = vmatprep.subr.mxu0 0.0
        %590 = vmatpush1.xpose.msra.mxu0 0.0
        %591 = vmatprep.subr.mxu0 0.0
        %592 = vmatpush1.xpose.msra.mxu0 0.0
        %593 = vmatprep.subr.mxu0 0.0
        %594 = vmatpush1.xpose.msra.mxu0 0.0
        %595 = vmatprep.subr.mxu0 0.0
        %596 = vmatpush1.xpose.msra.mxu0 0.0
        %597 = vmatprep.subr.mxu0 0.0
        %598 = vmatpush1.xpose.msra.mxu0 0.0
        %599 = vmatprep.subr.mxu0 0.0
        %600 = vmatpush1.xpose.msra.mxu0 0.0
        %601 = vmatprep.subr.mxu0 0.0
        %602 = vmatpush1.xpose.msra.mxu0 0.0
        %603 = vmatprep.subr.mxu0 0.0
        %604 = vmatpush1.xpose.msra.mxu0 0.0
        %605 = vmatprep.subr.mxu0 0.0
        %606 = vmatpush1.xpose.msra.mxu0 0.0
        %607 = vmatprep.subr.mxu0 0.0
        %608 = vmatpush1.xpose.msra.mxu0 0.0
        %609 = vmatprep.subr.mxu0 0.0
        %610 = vmatpush1.xpose.msra.mxu0 0.0
        %611 = vmatprep.subr.mxu0 0.0
        %612 = vmatpush1.xpose.msra.mxu0 0.0
        %613 = vmatprep.subr.mxu0 0.0
        %614 = vmatpush1.xpose.msra.mxu0 0.0
        %615 = vmatprep.subr.mxu0 0.0
        %616 = vmatpush1.xpose.msra.mxu0 0.0
        %617 = vmatprep.subr.mxu0 0.0
        %618 = vmatpush1.xpose.msra.mxu0 0.0
        %619 = vmatprep.subr.mxu0 0.0
        %620 = vmatpush1.xpose.msra.mxu0 0.0
        %621 = vmatprep.subr.mxu0 0.0
        %622 = vmatpush1.xpose.msra.mxu0 0.0
        %623 = vmatprep.subr.mxu0 0.0
        %624 = vmatpush1.xpose.msra.mxu0 0.0
        %625 = vmatprep.mubr.f32.mxu0 0.0
        %626 = vmatmul.mubr.f32.gmra.mrb[0].mxu0 %v557
        %v627 = vpop.f32.mrb[0].mxu0
        %v628 = vadd.f32 0.0, %v627
        %v629 = vpop.f32.mrb[0].mxu0
        %630 = vdwg.mxu0
        %v631 = vsel %vm385, %v628, -inf
        %v632 = vsel %vm389, %v631, -inf
        %633 = vmax.xlane.f32.xlu0 %v632
        %v634 = vpop.xlane.xlu0 %633
        %v635 = vsub.f32 %v631, %v634
        %v636 = vmul.f32 %v635, 1.442695
        %v637 = vpow.pop %v636
        %v638 = vsel %vm389, %v637, 0.0
        %639 = vadd.xlane.f32.xlu0 %v638
        %v640 = vpop.xlane.xlu0 %639
        %v641 = vrcp.pop %v640
        %v642 = vmul.f32 %v637, %v641
        %643 = vrot.lane.b32.xlu0 %v377, 56
        %v644 = vpop.permute.xlu0 %643
        %v647 = vsel %vm389, %v642, 0
        %649 = vmatprep.subr.mxu0 0.0
        %650 = vmatpush1.msra.mxu0 %v644
        %651 = vmatprep.subr.mxu0 0.0
        %652 = vmatpush1.msra.mxu0 0.0
        %653 = vmatprep.subr.mxu0 0.0
        %654 = vmatpush1.msra.mxu0 0.0
        %655 = vmatprep.subr.mxu0 0.0
        %656 = vmatpush1.msra.mxu0 0.0
        %657 = vmatprep.subr.mxu0 0.0
        %658 = vmatpush1.msra.mxu0 0.0
        %659 = vmatprep.subr.mxu0 0.0
        %660 = vmatpush1.msra.mxu0 0.0
        %661 = vmatprep.subr.mxu0 0.0
        %662 = vmatpush1.msra.mxu0 0.0
        %663 = vmatprep.subr.mxu0 0.0
        %664 = vmatpush1.msra.mxu0 0.0
        %665 = vmatprep.subr.mxu0 0.0
        %666 = vmatpush1.msra.mxu0 0.0
        %667 = vmatprep.subr.mxu0 0.0
        %668 = vmatpush1.msra.mxu0 0.0
        %669 = vmatprep.subr.mxu0 0.0
        %670 = vmatpush1.msra.mxu0 0.0
        %671 = vmatprep.subr.mxu0 0.0
        %672 = vmatpush1.msra.mxu0 0.0
        %673 = vmatprep.subr.mxu0 0.0
        %674 = vmatpush1.msra.mxu0 0.0
        %675 = vmatprep.subr.mxu0 0.0
        %676 = vmatpush1.msra.mxu0 0.0
        %677 = vmatprep.subr.mxu0 0.0
        %678 = vmatpush1.msra.mxu0 0.0
        %679 = vmatprep.subr.mxu0 0.0
        %680 = vmatpush1.msra.mxu0 0.0
        %681 = vmatprep.subr.mxu0 0.0
        %682 = vmatpush1.msra.mxu0 0.0
        %683 = vmatprep.subr.mxu0 0.0
        %684 = vmatpush1.msra.mxu0 0.0
        %685 = vmatprep.subr.mxu0 0.0
        %686 = vmatpush1.msra.mxu0 0.0
        %687 = vmatprep.subr.mxu0 0.0
        %688 = vmatpush1.msra.mxu0 0.0
        %689 = vmatprep.subr.mxu0 0.0
        %690 = vmatpush1.msra.mxu0 0.0
        %691 = vmatprep.subr.mxu0 0.0
        %692 = vmatpush1.msra.mxu0 0.0
        %693 = vmatprep.subr.mxu0 0.0
        %694 = vmatpush1.msra.mxu0 0.0
        %695 = vmatprep.subr.mxu0 0.0
        %696 = vmatpush1.msra.mxu0 0.0
        %697 = vmatprep.subr.mxu0 0.0
        %698 = vmatpush1.msra.mxu0 0.0
        %699 = vmatprep.subr.mxu0 0.0
        %700 = vmatpush1.msra.mxu0 0.0
        %701 = vmatprep.subr.mxu0 0.0
        %702 = vmatpush1.msra.mxu0 0.0
        %703 = vmatprep.subr.mxu0 0.0
        %704 = vmatpush1.msra.mxu0 0.0
        %705 = vmatprep.subr.mxu0 0.0
        %706 = vmatpush1.msra.mxu0 0.0
        %707 = vmatprep.subr.mxu0 0.0
        %708 = vmatpush1.msra.mxu0 0.0
        %709 = vmatprep.subr.mxu0 0.0
        %710 = vmatpush1.msra.mxu0 0.0
        %711 = vmatprep.subr.mxu0 0.0
        %712 = vmatpush1.msra.mxu0 0.0
        %713 = vmatprep.mubr.f32.mxu0 0.0
        %714 = vmatmul.mubr.f32.gmra.mrb[0].mxu0 %v647
        %v715 = vpop.f32.mrb[0].mxu0
        %v716 = vadd.f32 0.0, %v715
        %v717 = vpop.f32.mrb[0].mxu0
        %718 = vdwg.mxu0
        %719 = vrot.lane.b32.xlu0 %v380, 112
        %v720 = vpop.permute.xlu0 %719
        %721 = vrot.lane.b32.xlu0 %v377, 80
        %v722 = vpop.permute.xlu0 %721
        %v723 = vsel %vm389, %v720, 0
        %v725 = vsel %vm389, %v722, 0
        %727 = vmatprep.subr.mxu0 0.0
        %728 = vmatpush1.xpose.msra.mxu0 %v725
        %729 = vmatprep.subr.mxu0 0.0
        %730 = vmatpush1.xpose.msra.mxu0 0.0
        %731 = vmatprep.subr.mxu0 0.0
        %732 = vmatpush1.xpose.msra.mxu0 0.0
        %733 = vmatprep.subr.mxu0 0.0
        %734 = vmatpush1.xpose.msra.mxu0 0.0
        %735 = vmatprep.subr.mxu0 0.0
        %736 = vmatpush1.xpose.msra.mxu0 0.0
        %737 = vmatprep.subr.mxu0 0.0
        %738 = vmatpush1.xpose.msra.mxu0 0.0
        %739 = vmatprep.subr.mxu0 0.0
        %740 = vmatpush1.xpose.msra.mxu0 0.0
        %741 = vmatprep.subr.mxu0 0.0
        %742 = vmatpush1.xpose.msra.mxu0 0.0
        %743 = vmatprep.subr.mxu0 0.0
        %744 = vmatpush1.xpose.msra.mxu0 0.0
        %745 = vmatprep.subr.mxu0 0.0
        %746 = vmatpush1.xpose.msra.mxu0 0.0
        %747 = vmatprep.subr.mxu0 0.0
        %748 = vmatpush1.xpose.msra.mxu0 0.0
        %749 = vmatprep.subr.mxu0 0.0
        %750 = vmatpush1.xpose.msra.mxu0 0.0
        %751 = vmatprep.subr.mxu0 0.0
        %752 = vmatpush1.xpose.msra.mxu0 0.0
        %753 = vmatprep.subr.mxu0 0.0
        %754 = vmatpush1.xpose.msra.mxu0 0.0
        %755 = vmatprep.subr.mxu0 0.0
        %756 = vmatpush1.xpose.msra.mxu0 0.0
        %757 = vmatprep.subr.mxu0 0.0
        %758 = vmatpush1.xpose.msra.mxu0 0.0
        %759 = vmatprep.subr.mxu0 0.0
        %760 = vmatpush1.xpose.msra.mxu0 0.0
        %761 = vmatprep.subr.mxu0 0.0
        %762 = vmatpush1.xpose.msra.mxu0 0.0
        %763 = vmatprep.subr.mxu0 0.0
        %764 = vmatpush1.xpose.msra.mxu0 0.0
        %765 = vmatprep.subr.mxu0 0.0
        %766 = vmatpush1.xpose.msra.mxu0 0.0
        %767 = vmatprep.subr.mxu0 0.0
        %768 = vmatpush1.xpose.msra.mxu0 0.0
        %769 = vmatprep.subr.mxu0 0.0
        %770 = vmatpush1.xpose.msra.mxu0 0.0
        %771 = vmatprep.subr.mxu0 0.0
        %772 = vmatpush1.xpose.msra.mxu0 0.0
        %773 = vmatprep.subr.mxu0 0.0
        %774 = vmatpush1.xpose.msra.mxu0 0.0
        %775 = vmatprep.subr.mxu0 0.0
        %776 = vmatpush1.xpose.msra.mxu0 0.0
        %777 = vmatprep.subr.mxu0 0.0
        %778 = vmatpush1.xpose.msra.mxu0 0.0
        %779 = vmatprep.subr.mxu0 0.0
        %780 = vmatpush1.xpose.msra.mxu0 0.0
        %781 = vmatprep.subr.mxu0 0.0
        %782 = vmatpush1.xpose.msra.mxu0 0.0
        %783 = vmatprep.subr.mxu0 0.0
        %784 = vmatpush1.xpose.msra.mxu0 0.0
        %785 = vmatprep.subr.mxu0 0.0
        %786 = vmatpush1.xpose.msra.mxu0 0.0
        %787 = vmatprep.subr.mxu0 0.0
        %788 = vmatpush1.xpose.msra.mxu0 0.0
        %789 = vmatprep.subr.mxu0 0.0
        %790 = vmatpush1.xpose.msra.mxu0 0.0
        %791 = vmatprep.mubr.f32.mxu0 0.0
        %792 = vmatmul.mubr.f32.gmra.mrb[0].mxu0 %v723
        %v793 = vpop.f32.mrb[0].mxu0
        %v794 = vadd.f32 0.0, %v793
        %v795 = vpop.f32.mrb[0].mxu0
        %796 = vdwg.mxu0
        %v797 = vsel %vm385, %v794, -inf
        %v798 = vsel %vm389, %v797, -inf
        %799 = vmax.xlane.f32.xlu0 %v798
        %v800 = vpop.xlane.xlu0 %799
        %v801 = vsub.f32 %v797, %v800
        %v802 = vmul.f32 %v801, 1.442695
        %v803 = vpow.pop %v802
        %v804 = vsel %vm389, %v803, 0.0
        %805 = vadd.xlane.f32.xlu0 %v804
        %v806 = vpop.xlane.xlu0 %805
        %v807 = vrcp.pop %v806
        %v808 = vmul.f32 %v803, %v807
        %809 = vrot.lane.b32.xlu0 %v377, 48
        %v810 = vpop.permute.xlu0 %809
        %v813 = vsel %vm389, %v808, 0
        %815 = vmatprep.subr.mxu0 0.0
        %816 = vmatpush1.msra.mxu0 %v810
        %817 = vmatprep.subr.mxu0 0.0
        %818 = vmatpush1.msra.mxu0 0.0
        %819 = vmatprep.subr.mxu0 0.0
        %820 = vmatpush1.msra.mxu0 0.0
        %821 = vmatprep.subr.mxu0 0.0
        %822 = vmatpush1.msra.mxu0 0.0
        %823 = vmatprep.subr.mxu0 0.0
        %824 = vmatpush1.msra.mxu0 0.0
        %825 = vmatprep.subr.mxu0 0.0
        %826 = vmatpush1.msra.mxu0 0.0
        %827 = vmatprep.subr.mxu0 0.0
        %828 = vmatpush1.msra.mxu0 0.0
        %829 = vmatprep.subr.mxu0 0.0
        %830 = vmatpush1.msra.mxu0 0.0
        %831 = vmatprep.subr.mxu0 0.0
        %832 = vmatpush1.msra.mxu0 0.0
        %833 = vmatprep.subr.mxu0 0.0
        %834 = vmatpush1.msra.mxu0 0.0
        %835 = vmatprep.subr.mxu0 0.0
        %836 = vmatpush1.msra.mxu0 0.0
        %837 = vmatprep.subr.mxu0 0.0
        %838 = vmatpush1.msra.mxu0 0.0
        %839 = vmatprep.subr.mxu0 0.0
        %840 = vmatpush1.msra.mxu0 0.0
        %841 = vmatprep.subr.mxu0 0.0
        %842 = vmatpush1.msra.mxu0 0.0
        %843 = vmatprep.subr.mxu0 0.0
        %844 = vmatpush1.msra.mxu0 0.0
        %845 = vmatprep.subr.mxu0 0.0
        %846 = vmatpush1.msra.mxu0 0.0
        %847 = vmatprep.subr.mxu0 0.0
        %848 = vmatpush1.msra.mxu0 0.0
        %849 = vmatprep.subr.mxu0 0.0
        %850 = vmatpush1.msra.mxu0 0.0
        %851 = vmatprep.subr.mxu0 0.0
        %852 = vmatpush1.msra.mxu0 0.0
        %853 = vmatprep.subr.mxu0 0.0
        %854 = vmatpush1.msra.mxu0 0.0
        %855 = vmatprep.subr.mxu0 0.0
        %856 = vmatpush1.msra.mxu0 0.0
        %857 = vmatprep.subr.mxu0 0.0
        %858 = vmatpush1.msra.mxu0 0.0
        %859 = vmatprep.subr.mxu0 0.0
        %860 = vmatpush1.msra.mxu0 0.0
        %861 = vmatprep.subr.mxu0 0.0
        %862 = vmatpush1.msra.mxu0 0.0
        %863 = vmatprep.subr.mxu0 0.0
        %864 = vmatpush1.msra.mxu0 0.0
        %865 = vmatprep.subr.mxu0 0.0
        %866 = vmatpush1.msra.mxu0 0.0
        %867 = vmatprep.subr.mxu0 0.0
        %868 = vmatpush1.msra.mxu0 0.0
        %869 = vmatprep.subr.mxu0 0.0
        %870 = vmatpush1.msra.mxu0 0.0
        %871 = vmatprep.subr.mxu0 0.0
        %872 = vmatpush1.msra.mxu0 0.0
        %873 = vmatprep.subr.mxu0 0.0
        %874 = vmatpush1.msra.mxu0 0.0
        %875 = vmatprep.subr.mxu0 0.0
        %876 = vmatpush1.msra.mxu0 0.0
        %877 = vmatprep.subr.mxu0 0.0
        %878 = vmatpush1.msra.mxu0 0.0
        %879 = vmatprep.mubr.f32.mxu0 0.0
        %880 = vmatmul.mubr.f32.gmra.mrb[0].mxu0 %v813
        %v881 = vpop.f32.mrb[0].mxu0
        %v882 = vadd.f32 0.0, %v881
        %v883 = vpop.f32.mrb[0].mxu0
        %884 = vdwg.mxu0
        %885 = vrot.lane.b32.xlu0 %v380, 104
        %v886 = vpop.permute.xlu0 %885
        %887 = vrot.lane.b32.xlu0 %v377, 72
        %v888 = vpop.permute.xlu0 %887
        %v889 = vsel %vm389, %v886, 0
        %v891 = vsel %vm389, %v888, 0
        %893 = vmatprep.subr.mxu0 0.0
        %894 = vmatpush1.xpose.msra.mxu0 %v891
        %895 = vmatprep.subr.mxu0 0.0
        %896 = vmatpush1.xpose.msra.mxu0 0.0
        %897 = vmatprep.subr.mxu0 0.0
        %898 = vmatpush1.xpose.msra.mxu0 0.0
        %899 = vmatprep.subr.mxu0 0.0
        %900 = vmatpush1.xpose.msra.mxu0 0.0
        %901 = vmatprep.subr.mxu0 0.0
        %902 = vmatpush1.xpose.msra.mxu0 0.0
        %903 = vmatprep.subr.mxu0 0.0
        %904 = vmatpush1.xpose.msra.mxu0 0.0
        %905 = vmatprep.subr.mxu0 0.0
        %906 = vmatpush1.xpose.msra.mxu0 0.0
        %907 = vmatprep.subr.mxu0 0.0
        %908 = vmatpush1.xpose.msra.mxu0 0.0
        %909 = vmatprep.subr.mxu0 0.0
        %910 = vmatpush1.xpose.msra.mxu0 0.0
        %911 = vmatprep.subr.mxu0 0.0
        %912 = vmatpush1.xpose.msra.mxu0 0.0
        %913 = vmatprep.subr.mxu0 0.0
        %914 = vmatpush1.xpose.msra.mxu0 0.0
        %915 = vmatprep.subr.mxu0 0.0
        %916 = vmatpush1.xpose.msra.mxu0 0.0
        %917 = vmatprep.subr.mxu0 0.0
        %918 = vmatpush1.xpose.msra.mxu0 0.0
        %919 = vmatprep.subr.mxu0 0.0
        %920 = vmatpush1.xpose.msra.mxu0 0.0
        %921 = vmatprep.subr.mxu0 0.0
        %922 = vmatpush1.xpose.msra.mxu0 0.0
        %923 = vmatprep.subr.mxu0 0.0
        %924 = vmatpush1.xpose.msra.mxu0 0.0
        %925 = vmatprep.subr.mxu0 0.0
        %926 = vmatpush1.xpose.msra.mxu0 0.0
        %927 = vmatprep.subr.mxu0 0.0
        %928 = vmatpush1.xpose.msra.mxu0 0.0
        %929 = vmatprep.subr.mxu0 0.0
        %930 = vmatpush1.xpose.msra.mxu0 0.0
        %931 = vmatprep.subr.mxu0 0.0
        %932 = vmatpush1.xpose.msra.mxu0 0.0
        %933 = vmatprep.subr.mxu0 0.0
        %934 = vmatpush1.xpose.msra.mxu0 0.0
        %935 = vmatprep.subr.mxu0 0.0
        %936 = vmatpush1.xpose.msra.mxu0 0.0
        %937 = vmatprep.subr.mxu0 0.0
        %938 = vmatpush1.xpose.msra.mxu0 0.0
        %939 = vmatprep.subr.mxu0 0.0
        %940 = vmatpush1.xpose.msra.mxu0 0.0
        %941 = vmatprep.subr.mxu0 0.0
        %942 = vmatpush1.xpose.msra.mxu0 0.0
        %943 = vmatprep.subr.mxu0 0.0
        %944 = vmatpush1.xpose.msra.mxu0 0.0
        %945 = vmatprep.subr.mxu0 0.0
        %946 = vmatpush1.xpose.msra.mxu0 0.0
        %947 = vmatprep.subr.mxu0 0.0
        %948 = vmatpush1.xpose.msra.mxu0 0.0
        %949 = vmatprep.subr.mxu0 0.0
        %950 = vmatpush1.xpose.msra.mxu0 0.0
        %951 = vmatprep.subr.mxu0 0.0
        %952 = vmatpush1.xpose.msra.mxu0 0.0
        %953 = vmatprep.subr.mxu0 0.0
        %954 = vmatpush1.xpose.msra.mxu0 0.0
        %955 = vmatprep.subr.mxu0 0.0
        %956 = vmatpush1.xpose.msra.mxu0 0.0
        %957 = vmatprep.mubr.f32.mxu0 0.0
        %958 = vmatmul.mubr.f32.gmra.mrb[0].mxu0 %v889
        %v959 = vpop.f32.mrb[0].mxu0
        %v960 = vadd.f32 0.0, %v959
        %v961 = vpop.f32.mrb[0].mxu0
        %962 = vdwg.mxu0
        %v963 = vsel %vm385, %v960, -inf
        %v964 = vsel %vm389, %v963, -inf
        %965 = vmax.xlane.f32.xlu0 %v964
        %v966 = vpop.xlane.xlu0 %965
        %v967 = vsub.f32 %v963, %v966
        %v968 = vmul.f32 %v967, 1.442695
        %v969 = vpow.pop %v968
        %v970 = vsel %vm389, %v969, 0.0
        %971 = vadd.xlane.f32.xlu0 %v970
        %v972 = vpop.xlane.xlu0 %971
        %v973 = vrcp.pop %v972
        %v974 = vmul.f32 %v969, %v973
        %975 = vrot.lane.b32.xlu0 %v377, 40
        %v976 = vpop.permute.xlu0 %975
        %v979 = vsel %vm389, %v974, 0
        %981 = vmatprep.subr.mxu0 0.0
        %982 = vmatpush1.msra.mxu0 %v976
        %983 = vmatprep.subr.mxu0 0.0
        %984 = vmatpush1.msra.mxu0 0.0
        %985 = vmatprep.subr.mxu0 0.0
        %986 = vmatpush1.msra.mxu0 0.0
        %987 = vmatprep.subr.mxu0 0.0
        %988 = vmatpush1.msra.mxu0 0.0
        %989 = vmatprep.subr.mxu0 0.0
        %990 = vmatpush1.msra.mxu0 0.0
        %991 = vmatprep.subr.mxu0 0.0
        %992 = vmatpush1.msra.mxu0 0.0
        %993 = vmatprep.subr.mxu0 0.0
        %994 = vmatpush1.msra.mxu0 0.0
        %995 = vmatprep.subr.mxu0 0.0
        %996 = vmatpush1.msra.mxu0 0.0
        %997 = vmatprep.subr.mxu0 0.0
        %998 = vmatpush1.msra.mxu0 0.0
        %999 = vmatprep.subr.mxu0 0.0
        %1000 = vmatpush1.msra.mxu0 0.0
        %1001 = vmatprep.subr.mxu0 0.0
        %1002 = vmatpush1.msra.mxu0 0.0
        %1003 = vmatprep.subr.mxu0 0.0
        %1004 = vmatpush1.msra.mxu0 0.0
        %1005 = vmatprep.subr.mxu0 0.0
        %1006 = vmatpush1.msra.mxu0 0.0
        %1007 = vmatprep.subr.mxu0 0.0
        %1008 = vmatpush1.msra.mxu0 0.0
        %1009 = vmatprep.subr.mxu0 0.0
        %1010 = vmatpush1.msra.mxu0 0.0
        %1011 = vmatprep.subr.mxu0 0.0
        %1012 = vmatpush1.msra.mxu0 0.0
        %1013 = vmatprep.subr.mxu0 0.0
        %1014 = vmatpush1.msra.mxu0 0.0
        %1015 = vmatprep.subr.mxu0 0.0
        %1016 = vmatpush1.msra.mxu0 0.0
        %1017 = vmatprep.subr.mxu0 0.0
        %1018 = vmatpush1.msra.mxu0 0.0
        %1019 = vmatprep.subr.mxu0 0.0
        %1020 = vmatpush1.msra.mxu0 0.0
        %1021 = vmatprep.subr.mxu0 0.0
        %1022 = vmatpush1.msra.mxu0 0.0
        %1023 = vmatprep.subr.mxu0 0.0
        %1024 = vmatpush1.msra.mxu0 0.0
        %1025 = vmatprep.subr.mxu0 0.0
        %1026 = vmatpush1.msra.mxu0 0.0
        %1027 = vmatprep.subr.mxu0 0.0
        %1028 = vmatpush1.msra.mxu0 0.0
        %1029 = vmatprep.subr.mxu0 0.0
        %1030 = vmatpush1.msra.mxu0 0.0
        %1031 = vmatprep.subr.mxu0 0.0
        %1032 = vmatpush1.msra.mxu0 0.0
        %1033 = vmatprep.subr.mxu0 0.0
        %1034 = vmatpush1.msra.mxu0 0.0
        %1035 = vmatprep.subr.mxu0 0.0
        %1036 = vmatpush1.msra.mxu0 0.0
        %1037 = vmatprep.subr.mxu0 0.0
        %1038 = vmatpush1.msra.mxu0 0.0
        %1039 = vmatprep.subr.mxu0 0.0
        %1040 = vmatpush1.msra.mxu0 0.0
        %1041 = vmatprep.subr.mxu0 0.0
        %1042 = vmatpush1.msra.mxu0 0.0
        %1043 = vmatprep.subr.mxu0 0.0
        %1044 = vmatpush1.msra.mxu0 0.0
        %1045 = vmatprep.mubr.f32.mxu0 0.0
        %1046 = vmatmul.mubr.f32.gmra.mrb[0].mxu0 %v979
        %v1047 = vpop.f32.mrb[0].mxu0
        %v1048 = vadd.f32 0.0, %v1047
        %v1049 = vpop.f32.mrb[0].mxu0
        %1050 = vdwg.mxu0
        %1052 = vrot.lane.b32.xlu0 %v716, 8
        %v1053 = vpop.permute.xlu0 %1052
        %1056 = vrot.lane.b32.xlu0 %v882, 16
        %v1057 = vpop.permute.xlu0 %1056
        %1060 = vrot.lane.b32.xlu0 %v1048, 24
        %v1061 = vpop.permute.xlu0 %1060
        %v1063 = vsel %vm389, %v550, %v1053
        %vm1064 = vcmask 130048
        %v1065 = vsel %vm1064, %v1063, %v1057
        %vm1066 = vcmask 195584
        %v1067 = vsel %vm1066, %v1065, %v1061
        %v1068 = vld [vmem:[#allocation8] sm:$0xff]
        %v1069 = vld [vmem:[#allocation8 + $0x8] sm:$0xff]
        %v1070 = vld [vmem:[#allocation8 + $0x10] sm:$0xff]
        %v1071 = vld [vmem:[#allocation8 + $0x18] sm:$0xff]
        %v1072 = vld [vmem:[#allocation10] sm:$0x1]
        %v1074 = vlaneseq
        %v1075 = vshrl.u32 %v1074, 7
        %v1076 = vsub.s32 0, %v1075
        %v1077 = vrot.slane %v1072, %v1076
        %v1080 = vsel %vm306, %v1067, 0
        %1082 = vmatprep.subr.mxu0 0.0
        %1083 = vmatpush1.msra.mxu0 %v1068
        %1084 = vmatprep.subr.mxu0 0.0
        %1085 = vmatpush1.msra.mxu0 %v1069
        %1086 = vmatprep.subr.mxu0 0.0
        %1087 = vmatpush1.msra.mxu0 %v1070
        %1088 = vmatprep.subr.mxu0 0.0
        %1089 = vmatpush1.msra.mxu0 %v1071
        %1090 = vmatprep.subr.mxu0 0.0
        %1091 = vmatpush1.msra.mxu0 0.0
        %1092 = vmatprep.subr.mxu0 0.0
        %1093 = vmatpush1.msra.mxu0 0.0
        %1094 = vmatprep.subr.mxu0 0.0
        %1095 = vmatpush1.msra.mxu0 0.0
        %1096 = vmatprep.subr.mxu0 0.0
        %1097 = vmatpush1.msra.mxu0 0.0
        %1098 = vmatprep.subr.mxu0 0.0
        %1099 = vmatpush1.msra.mxu0 0.0
        %1100 = vmatprep.subr.mxu0 0.0
        %1101 = vmatpush1.msra.mxu0 0.0
        %1102 = vmatprep.subr.mxu0 0.0
        %1103 = vmatpush1.msra.mxu0 0.0
        %1104 = vmatprep.subr.mxu0 0.0
        %1105 = vmatpush1.msra.mxu0 0.0
        %1106 = vmatprep.subr.mxu0 0.0
        %1107 = vmatpush1.msra.mxu0 0.0
        %1108 = vmatprep.subr.mxu0 0.0
        %1109 = vmatpush1.msra.mxu0 0.0
        %1110 = vmatprep.subr.mxu0 0.0
        %1111 = vmatpush1.msra.mxu0 0.0
        %1112 = vmatprep.subr.mxu0 0.0
        %1113 = vmatpush1.msra.mxu0 0.0
        %1114 = vmatprep.subr.mxu0 0.0
        %1115 = vmatpush1.msra.mxu0 0.0
        %1116 = vmatprep.subr.mxu0 0.0
        %1117 = vmatpush1.msra.mxu0 0.0
        %1118 = vmatprep.subr.mxu0 0.0
        %1119 = vmatpush1.msra.mxu0 0.0
        %1120 = vmatprep.subr.mxu0 0.0
        %1121 = vmatpush1.msra.mxu0 0.0
        %1122 = vmatprep.subr.mxu0 0.0
        %1123 = vmatpush1.msra.mxu0 0.0
        %1124 = vmatprep.subr.mxu0 0.0
        %1125 = vmatpush1.msra.mxu0 0.0
        %1126 = vmatprep.subr.mxu0 0.0
        %1127 = vmatpush1.msra.mxu0 0.0
        %1128 = vmatprep.subr.mxu0 0.0
        %1129 = vmatpush1.msra.mxu0 0.0
        %1130 = vmatprep.subr.mxu0 0.0
        %1131 = vmatpush1.msra.mxu0 0.0
        %1132 = vmatprep.subr.mxu0 0.0
        %1133 = vmatpush1.msra.mxu0 0.0
        %1134 = vmatprep.subr.mxu0 0.0
        %1135 = vmatpush1.msra.mxu0 0.0
        %1136 = vmatprep.subr.mxu0 0.0
        %1137 = vmatpush1.msra.mxu0 0.0
        %1138 = vmatprep.subr.mxu0 0.0
        %1139 = vmatpush1.msra.mxu0 0.0
        %1140 = vmatprep.subr.mxu0 0.0
        %1141 = vmatpush1.msra.mxu0 0.0
        %1142 = vmatprep.subr.mxu0 0.0
        %1143 = vmatpush1.msra.mxu0 0.0
        %1144 = vmatprep.subr.mxu0 0.0
        %1145 = vmatpush1.msra.mxu0 0.0
        %1146 = vmatprep.mubr.f32.mxu0 0.0
        %1147 = vmatmul.mubr.f32.gmra.mrb[0].mxu0 %v1080
        %v1148 = vpop.f32.mrb[0].mxu0
        %v1149 = vadd.f32 %v1077, %v1148
        %v1150 = vpop.f32.mrb[0].mxu0
        %1151 = vdwg.mxu0
        %1152 = vst.msk [vmem:[%s293] sm:$0xff] %vm306, %v1149
        %s1153 = sand.u32 %s142, 1
        %s1154 = scalar_lea.sflag [#allocation4], %s1153
        %s1155 = sand.u32 %s142, 1
        %s1156 = smul.addr %s1155, 8
        %s1157 = scalar_lea.vmem [#allocation11], %s1156
        // Predicated region
        $region61: #{tpu_custom_call.1} parent=39 // pred_check
          %p1158 = pneg %p152
        $region62: #{tpu_custom_call.1} parent=39 // pred_check_branch
          %1160 = sbr.rel (%p1158) target = $region64
        $region63: #{tpu_custom_call.1} parent=39 // pred_region
          %s1162 = ssub.s32 128, 128
          %1163 = vsyncadd %s1154, %s1162
          %s1164 = smul.addr %s24, 128
          %s1165 = scalar_lea.hbm %s5, %s1164
          %s1167 = sshll.u32 %s1157, 4
          %s1168 = int_to_ptr.vmem [resolvable:$true] %s1167
          %1170 = dma.vmem_to_hbm [thread:$0]  %s1168, 128, %s1165, %s1154
        $region64: #{tpu_custom_call.1} parent=39 // pred_fallthru
          _
      $region40: #{tpu_custom_call.1} parent=5 // pred_fallthru
        _
      %p1171 = scmp.le.s32.totalorder 2, %s19
      // Predicated region
      $region65: #{tpu_custom_call.1} parent=5 // pred_check
        %p1172 = pneg %p1171
      $region66: #{tpu_custom_call.1} parent=5 // pred_check_branch
        %1174 = sbr.rel (%p1172) target = $region68
      $region67: #{tpu_custom_call.1} parent=5 // pred_region
        %s1175 = ssub.s32 %s19, 2
        // Predicated region
        $region69: #{tpu_custom_call.1} parent=67 // pred_check
          %p1176 = pneg %p158
        $region70: #{tpu_custom_call.1} parent=67 // pred_check_branch
          %1178 = sbr.rel (%p1176) target = $region72
        $region71: #{tpu_custom_call.1} parent=67 // pred_region
          %s1179 = sand.u32 %s143, 1
          %s1180 = scalar_lea.sflag [#allocation4], %s1179
          %s1181 = sand.u32 %s143, 1
          %s1182 = smul.addr %s1181, 8
          %s1183 = scalar_lea.vmem [#allocation11], %s1182
          %1184 = dma.done %s1180, 128
        $region72: #{tpu_custom_call.1} parent=67 // pred_fallthru
          _
      $region68: #{tpu_custom_call.1} parent=5 // pred_fallthru
        _
    $region6: #{tpu_custom_call.1} parent=1 // loop_footer
      %s23 = sadd.s32 1, %s19
    $region7: #{tpu_custom_call.1} parent=1 // loop_footer_branch
      %18 = sbr.rel target = $region3
    $region8: #{tpu_custom_call.1} parent=1 // loop_exit
      _
    %1185 = vsyncpa [#allocation3], 1
    %s1186 = scalar_lea.sflag [#allocation3], 1
    %1187 = vsyncpa %s1186, 1
    %1188 = vsyncpa [#allocation6], 1
    %1189 = vsyncpa [#allocation9], 1
    %1190 = vsyncpa [#allocation4], 1
    %s1191 = scalar_lea.sflag [#allocation4], 1
    %1192 = vsyncpa %s1191, 1

</llo_original>
